<compile_context>
chip_gen: v7x
topology: tpu7x:2x2x1
jax: 0.10.0
libtpu: 0.0.40
codegen_flags: <defaults>
</compile_context>

<pallas_src>
import functools

import numpy as np
import jax
import jax.numpy as jnp
from jax.experimental import pallas as pl
from jax.experimental.pallas import tpu as pltpu

LANE = 128
CHUNK = 8  # sublane rows per inner-loop step; bounds live vregs (< 64) at any tm


# ----------------------------- Pallas kernel -------------------------------
# Input block  (11, tm, 128): rows 0-3 quaternion wxyz, 4-6 log-scale,
#                             7-9 logit-color, 10 logit-opacity.
# Output block (10, tm, 128): rows 0-5 unique covariance entries
#                             (c00, c01, c02, c11, c12, c22),
#                             rows 6-8 sigmoid(color), row 9 sigmoid(opacity).
def _gaussian_kernel(x_ref, o_ref):
    tm = x_ref.shape[1]
    n_chunks = tm // CHUNK

    def body(i, carry):
        r = pl.multiple_of(i * CHUNK, CHUNK)
        sl = pl.ds(r, CHUNK)

        # quaternion normalize (F.normalize, eps=1e-12):
        # rsqrt(max(|q|^2, 1e-24)) == 1 / max(|q|, 1e-12)
        qw = x_ref[0, sl, :]
        qx = x_ref[1, sl, :]
        qy = x_ref[2, sl, :]
        qz = x_ref[3, sl, :]                                   # each (CHUNK, 128)
        norm2 = qw * qw + qx * qx + qy * qy + qz * qz
        inv = jax.lax.rsqrt(jnp.maximum(norm2, 1e-24))
        qw = qw * inv
        qx = qx * inv
        qy = qy * inv
        qz = qz * inv

        # quaternion -> rotation matrix
        xx = qx * qx; yy = qy * qy; zz = qz * qz
        xy = qx * qy; xz = qx * qz; yz = qy * qz
        wx = qw * qx; wy = qw * qy; wz = qw * qz
        txx = xx + xx; tyy = yy + yy; tzz = zz + zz
        txy = xy + xy; txz = xz + xz; tyz = yz + yz
        twx = wx + wx; twy = wy + wy; twz = wz + wz

        R00 = 1.0 - tyy - tzz; R01 = txy - twz;       R02 = txz + twy
        R10 = txy + twz;       R11 = 1.0 - txx - tzz; R12 = tyz - twx
        R20 = txz - twy;       R21 = tyz + twx;       R22 = 1.0 - txx - tyy

        # Cov = (R S)(R S)^T with S = diag(exp(scale)); compute M = R*diag(s),
        # then only the 6 unique entries of the symmetric product.
        s0 = jnp.exp(x_ref[4, sl, :])
        s1 = jnp.exp(x_ref[5, sl, :])
        s2 = jnp.exp(x_ref[6, sl, :])

        m00 = R00 * s0; m01 = R01 * s1; m02 = R02 * s2
        m10 = R10 * s0; m11 = R11 * s1; m12 = R12 * s2
        m20 = R20 * s0; m21 = R21 * s1; m22 = R22 * s2

        o_ref[0, sl, :] = m00 * m00 + m01 * m01 + m02 * m02    # c00
        o_ref[1, sl, :] = m00 * m10 + m01 * m11 + m02 * m12    # c01
        o_ref[2, sl, :] = m00 * m20 + m01 * m21 + m02 * m22    # c02
        o_ref[3, sl, :] = m10 * m10 + m11 * m11 + m12 * m12    # c11
        o_ref[4, sl, :] = m10 * m20 + m11 * m21 + m12 * m22    # c12
        o_ref[5, sl, :] = m20 * m20 + m21 * m21 + m22 * m22    # c22

        o_ref[6, sl, :] = jax.nn.sigmoid(x_ref[7, sl, :])
        o_ref[7, sl, :] = jax.nn.sigmoid(x_ref[8, sl, :])
        o_ref[8, sl, :] = jax.nn.sigmoid(x_ref[9, sl, :])
        o_ref[9, sl, :] = jax.nn.sigmoid(x_ref[10, sl, :])
        return carry

    jax.lax.fori_loop(0, n_chunks, body, 0)


# ------------------------ channel-major kernel entry -------------------------
def gaussian_head_packed(packed, *, tm):
    """Primary (channel-major) contract.

    packed: (11, Mp, 128) f32 slab (quat wxyz, log-scale, logit-color,
            logit-opacity), Mp a multiple of tm, tm a multiple of 8.
    Returns (10, Mp, 128) f32 slab (c00,c01,c02,c11,c12,c22, rgb, opacity).

    Callers that keep parameters channel-major should use this directly and
    skip the (N, C) <-> slab transposes entirely.
    """
    _, Mp, lane = packed.shape
    assert lane == LANE and Mp % tm == 0 and tm % 8 == 0
    Np = Mp * LANE
    cost = pl.CostEstimate(flops=90 * Np, transcendentals=8 * Np,
                           bytes_accessed=(11 + 10) * 4 * Np)
    return pl.pallas_call(
        _gaussian_kernel,
        out_shape=jax.ShapeDtypeStruct((10, Mp, LANE), jnp.float32),
        grid_spec=pltpu.PrefetchScalarGridSpec(
            num_scalar_prefetch=0,
            grid=(Mp // tm,),
            in_specs=[pl.BlockSpec((11, tm, LANE), lambda i: (0, i, 0))],
            out_specs=pl.BlockSpec((10, tm, LANE), lambda i: (0, i, 0))),
        compiler_params=pltpu.CompilerParams(
            dimension_semantics=("parallel",)),
        cost_estimate=cost,
    )(packed)


# ------------------------------ JAX wrapper ---------------------------------
def _round_up(a, m):
    return ((a + m - 1) // m) * m


@functools.partial(jax.jit, static_argnames=("block_n",))
def gaussian_forward(positions, rotations, scales, colors, opacities,
                     block_n=32768):
    """Equivalent of GaussianModel.forward(); arbitrary N supported.

    block_n = gaussians per grid step (multiple of 1024). Double-buffered VMEM
    at block_n=32768 is ~5.5 MiB (safe on v5e's 16 MiB scoped default). On
    v6e/v7x raise block_n to 65536-131072 for ~3-7% per-step overhead (add
    vmem_limit_bytes to CompilerParams past ~65536).
    The whole function is jitted so the layout plumbing around the kernel is
    fused by XLA instead of running as separate HBM passes.
    """
    N = positions.shape[0]
    positions = jnp.asarray(positions, jnp.float32)

    # single (N, 11) slab -> one fused transpose / one DMA stream into the kernel
    packed_nc = jnp.concatenate(
        [jnp.asarray(rotations, jnp.float32),
         jnp.asarray(scales, jnp.float32),
         jnp.asarray(colors, jnp.float32),
         jnp.asarray(opacities, jnp.float32)], axis=1)          # (N, 11)

    # dense (channel, sublane-group, lane) layout; pad N so tiles divide evenly
    tm = max(8, block_n // LANE)            # sublane rows per tile
    M = pl.cdiv(N, LANE)                    # 128-wide gaussian groups
    # keep grid length >= ~4 when there is enough work so v7x's 2 TensorCores
    # both get steps and DMA overlaps compute; never below 8 sublanes.
    tm = max(8, min(tm, _round_up(pl.cdiv(M, 4), 8)))
    Mp = _round_up(M, tm)
    Np = Mp * LANE
    if Np != N:
        packed_nc = jnp.pad(packed_nc, ((0, Np - N), (0, 0)))   # zeros are safe
    packed = packed_nc.T.reshape(11, Mp, LANE)

    out = gaussian_head_packed(packed, tm=tm)                   # (10, Mp, 128)

    # Single transpose back to PyTorch (N, C) conventions; symmetric 3x3
    # expansion is a column gather fused into this same pass under jit.
    flat = out.reshape(10, Np)[:, :N].T                          # (N, 10)
    cov = flat[:, jnp.array([0, 1, 2, 1, 3, 4, 2, 4, 5])].reshape(N, 3, 3)
    return {
        "positions": positions,                                  # (N, 3)
        "covariance": cov,                                       # (N, 3, 3)
        "colors": flat[:, 6:9],                                  # (N, 3)
        "opacities": flat[:, 9:10],                              # (N, 1)
    }
    # TODO(synk): optional bf16 I/O path (halves HBM traffic for the
    # color/opacity/rotation channels) left out to keep covariance at f32
    # accuracy for the 1e-5 tolerance check.


# ------------------- deterministic parameter initialization ------------------
def init_gaussian_params(points_xyz, points_rgb):
    """Mirror GaussianModel.__init__ (parameters only, no optimization)."""
    points_xyz = jnp.asarray(points_xyz, jnp.float32)
    points_rgb = jnp.asarray(points_rgb, jnp.float32)
    n = points_xyz.shape[0]

    positions = points_xyz

    # rotations: identity quaternion [w, x, y, z]
    rotations = jnp.zeros((n, 4), jnp.float32).at[:, 0].set(1.0)

    # scales: local point density (KNN mean distance, incl. self)
    K = min(50, n - 1)
    d2 = jnp.sum((points_xyz[:, None, :] - points_xyz[None, :, :]) ** 2, axis=-1)
    knn_d2 = jnp.sort(d2, axis=1)[:, :K]
    mean_dists = jnp.mean(jnp.sqrt(knn_d2), axis=1, keepdims=True) * 2.0
    med = jnp.median(mean_dists)  # TODO(synk): torch.median is lower-median; jnp.median averages for even counts
    mean_dists = jnp.clip(mean_dists, 0.2 * med, 3.0 * med)
    scales = jnp.tile(jnp.log(mean_dists), (1, 3))

    # colors / opacities in logit space
    c = jnp.clip(points_rgb / 255.0, 0.001, 0.999)
    colors = jnp.log(c / (1.0 - c))
    opacities = 8.0 * jnp.ones((n, 1), jnp.float32)

    return positions, rotations, scales, colors, opacities


# ------------------------------ reference ------------------------------------
def _reference_forward(positions, rotations, scales, colors, opacities):
    q = rotations / jnp.maximum(
        jnp.linalg.norm(rotations, axis=-1, keepdims=True), 1e-12)
    w, x, y, z = q[:, 0], q[:, 1], q[:, 2], q[:, 3]
    R = jnp.stack([1 - 2*y*y - 2*z*z, 2*x*y - 2*w*z, 2*x*z + 2*w*y,
                   2*x*y + 2*w*z, 1 - 2*x*x - 2*z*z, 2*y*z - 2*w*x,
                   2*x*z - 2*w*y, 2*y*z + 2*w*x, 1 - 2*x*x - 2*y*y],
                  axis=-1).reshape(-1, 3, 3)
    S = jax.vmap(jnp.diag)(jnp.exp(scales))
    RS = jnp.einsum("nij,njk->nik", R, S)
    cov = jnp.einsum("nij,nkj->nik", RS, RS)
    return {"positions": positions,
            "covariance": cov,
            "colors": jax.nn.sigmoid(colors),
            "opacities": jax.nn.sigmoid(opacities)}


def _check(out, ref):
    for name in ("positions", "covariance", "colors", "opacities"):
        np.testing.assert_allclose(np.asarray(out[name]), np.asarray(ref[name]),
                                   rtol=1e-5, atol=1e-5)


if __name__ == "__main__":
    key = jax.random.PRNGKey(0)
    k_xyz, k_rgb, k_rot, k2 = jax.random.split(key, 4)

    # --- case 1: small point cloud through the full init path --------------
    N1 = 256
    points_xyz = jax.random.normal(k_xyz, (N1, 3), jnp.float32) * 2.0
    points_rgb = jax.random.uniform(k_rgb, (N1, 3), jnp.float32) * 255.0
    pos, rot, scl, col, opa = init_gaussian_params(points_xyz, points_rgb)
    # perturb rotations so covariance is non-trivial (still deterministic)
    rot = rot + 0.1 * jax.random.normal(k_rot, rot.shape, jnp.float32)

    out1 = gaussian_forward(pos, rot, scl, col, opa)
    out1 = jax.tree_util.tree_map(jax.block_until_ready, out1)
    _check(out1, _reference_forward(pos, rot, scl, col, opa))
    assert out1["positions"].shape == (N1, 3)
    assert out1["covariance"].shape == (N1, 3, 3)
    assert out1["colors"].shape == (N1, 3)
    assert out1["opacities"].shape == (N1, 1)

    # --- case 2: N not a multiple of the tile, multi-step grid + padding ---
    N2 = 2500
    ks = jax.random.split(k2, 5)
    pos2 = jax.random.normal(ks[0], (N2, 3), jnp.float32)
    rot2 = jax.random.normal(ks[1], (N2, 4), jnp.float32)
    scl2 = 0.3 * jax.random.normal(ks[2], (N2, 3), jnp.float32)
    col2 = jax.random.normal(ks[3], (N2, 3), jnp.float32)
    opa2 = jax.random.normal(ks[4], (N2, 1), jnp.float32)

    out2 = gaussian_forward(pos2, rot2, scl2, col2, opa2, block_n=1024)
    out2 = jax.tree_util.tree_map(jax.block_until_ready, out2)
    _check(out2, _reference_forward(pos2, rot2, scl2, col2, opa2))
    assert out2["covariance"].shape == (N2, 3, 3)

    print("KERNEL_OK")
</pallas_src>

<mosaic_0001>
module attributes {stable_mosaic.version = 11 : i64} {
  func.func @_gaussian_kernel(%arg0: i32, %arg1: memref<11x8x128xf32, #tpu.memory_space<vmem>>, %arg2: memref<10x8x128xf32, #tpu.memory_space<vmem>>) attributes {dimension_semantics = [#tpu.dimension_semantics<parallel>], iteration_bounds = array<i64: 1>, scalar_prefetch = 0 : i64, scratch_operands = 0 : i64, tpu.core_type = #tpu.core_type<tc>, window_params = [{transform_indices = @transform_0, window_bounds = array<i64: 11, 8, 128>}, {transform_indices = @transform_1, window_bounds = array<i64: 10, 8, 128>}]} {
    %c0_i32 = arith.constant 0 : i32
    %c8_i32 = arith.constant 8 : i32
    %0 = arith.muli %c0_i32, %c8_i32 : i32
    %1 = tpu.assume_multiple %0, 8 : i32
    %c0 = arith.constant 0 : index
    %2 = arith.index_cast %1 : i32 to index
    %c0_0 = arith.constant 0 : index
    %3 = vector.load %arg1[%c0, %2, %c0_0] : memref<11x8x128xf32, #tpu.memory_space<vmem>>, vector<1x8x128xf32>
    %4 = vector.shape_cast %3 : vector<1x8x128xf32> to vector<8x128xf32>
    %c1 = arith.constant 1 : index
    %5 = arith.index_cast %1 : i32 to index
    %c0_1 = arith.constant 0 : index
    %6 = vector.load %arg1[%c1, %5, %c0_1] : memref<11x8x128xf32, #tpu.memory_space<vmem>>, vector<1x8x128xf32>
    %7 = vector.shape_cast %6 : vector<1x8x128xf32> to vector<8x128xf32>
    %c2 = arith.constant 2 : index
    %8 = arith.index_cast %1 : i32 to index
    %c0_2 = arith.constant 0 : index
    %9 = vector.load %arg1[%c2, %8, %c0_2] : memref<11x8x128xf32, #tpu.memory_space<vmem>>, vector<1x8x128xf32>
    %10 = vector.shape_cast %9 : vector<1x8x128xf32> to vector<8x128xf32>
    %c3 = arith.constant 3 : index
    %11 = arith.index_cast %1 : i32 to index
    %c0_3 = arith.constant 0 : index
    %12 = vector.load %arg1[%c3, %11, %c0_3] : memref<11x8x128xf32, #tpu.memory_space<vmem>>, vector<1x8x128xf32>
    %13 = vector.shape_cast %12 : vector<1x8x128xf32> to vector<8x128xf32>
    %14 = arith.mulf %4, %4 : vector<8x128xf32>
    %15 = arith.mulf %7, %7 : vector<8x128xf32>
    %16 = arith.addf %14, %15 : vector<8x128xf32>
    %17 = arith.mulf %10, %10 : vector<8x128xf32>
    %18 = arith.addf %16, %17 : vector<8x128xf32>
    %19 = arith.mulf %13, %13 : vector<8x128xf32>
    %20 = arith.addf %18, %19 : vector<8x128xf32>
    %cst = arith.constant 1.000000e-24 : f32
    %21 = vector.broadcast %cst : f32 to vector<8x128xf32>
    %22 = arith.maximumf %20, %21 : vector<8x128xf32>
    %23 = math.rsqrt %22 : vector<8x128xf32>
    %24 = arith.mulf %4, %23 : vector<8x128xf32>
    %25 = arith.mulf %7, %23 : vector<8x128xf32>
    %26 = arith.mulf %10, %23 : vector<8x128xf32>
    %27 = arith.mulf %13, %23 : vector<8x128xf32>
    %28 = arith.mulf %25, %25 : vector<8x128xf32>
    %29 = arith.mulf %26, %26 : vector<8x128xf32>
    %30 = arith.mulf %27, %27 : vector<8x128xf32>
    %31 = arith.mulf %25, %26 : vector<8x128xf32>
    %32 = arith.mulf %25, %27 : vector<8x128xf32>
    %33 = arith.mulf %26, %27 : vector<8x128xf32>
    %34 = arith.mulf %24, %25 : vector<8x128xf32>
    %35 = arith.mulf %24, %26 : vector<8x128xf32>
    %36 = arith.mulf %24, %27 : vector<8x128xf32>
    %37 = arith.addf %28, %28 : vector<8x128xf32>
    %38 = arith.addf %29, %29 : vector<8x128xf32>
    %39 = arith.addf %30, %30 : vector<8x128xf32>
    %40 = arith.addf %31, %31 : vector<8x128xf32>
    %41 = arith.addf %32, %32 : vector<8x128xf32>
    %42 = arith.addf %33, %33 : vector<8x128xf32>
    %43 = arith.addf %34, %34 : vector<8x128xf32>
    %44 = arith.addf %35, %35 : vector<8x128xf32>
    %45 = arith.addf %36, %36 : vector<8x128xf32>
    %cst_4 = arith.constant 1.000000e+00 : f32
    %46 = vector.broadcast %cst_4 : f32 to vector<8x128xf32>
    %47 = arith.subf %46, %38 : vector<8x128xf32>
    %48 = arith.subf %47, %39 : vector<8x128xf32>
    %49 = arith.subf %40, %45 : vector<8x128xf32>
    %50 = arith.addf %41, %44 : vector<8x128xf32>
    %51 = arith.addf %40, %45 : vector<8x128xf32>
    %cst_5 = arith.constant 1.000000e+00 : f32
    %52 = vector.broadcast %cst_5 : f32 to vector<8x128xf32>
    %53 = arith.subf %52, %37 : vector<8x128xf32>
    %54 = arith.subf %53, %39 : vector<8x128xf32>
    %55 = arith.subf %42, %43 : vector<8x128xf32>
    %56 = arith.subf %41, %44 : vector<8x128xf32>
    %57 = arith.addf %42, %43 : vector<8x128xf32>
    %cst_6 = arith.constant 1.000000e+00 : f32
    %58 = vector.broadcast %cst_6 : f32 to vector<8x128xf32>
    %59 = arith.subf %58, %37 : vector<8x128xf32>
    %60 = arith.subf %59, %38 : vector<8x128xf32>
    %c4 = arith.constant 4 : index
    %61 = arith.index_cast %1 : i32 to index
    %c0_7 = arith.constant 0 : index
    %62 = vector.load %arg1[%c4, %61, %c0_7] : memref<11x8x128xf32, #tpu.memory_space<vmem>>, vector<1x8x128xf32>
    %63 = vector.shape_cast %62 : vector<1x8x128xf32> to vector<8x128xf32>
    %64 = math.exp %63 : vector<8x128xf32>
    %c5 = arith.constant 5 : index
    %65 = arith.index_cast %1 : i32 to index
    %c0_8 = arith.constant 0 : index
    %66 = vector.load %arg1[%c5, %65, %c0_8] : memref<11x8x128xf32, #tpu.memory_space<vmem>>, vector<1x8x128xf32>
    %67 = vector.shape_cast %66 : vector<1x8x128xf32> to vector<8x128xf32>
    %68 = math.exp %67 : vector<8x128xf32>
    %c6 = arith.constant 6 : index
    %69 = arith.index_cast %1 : i32 to index
    %c0_9 = arith.constant 0 : index
    %70 = vector.load %arg1[%c6, %69, %c0_9] : memref<11x8x128xf32, #tpu.memory_space<vmem>>, vector<1x8x128xf32>
    %71 = vector.shape_cast %70 : vector<1x8x128xf32> to vector<8x128xf32>
    %72 = math.exp %71 : vector<8x128xf32>
    %73 = arith.mulf %48, %64 : vector<8x128xf32>
    %74 = arith.mulf %49, %68 : vector<8x128xf32>
    %75 = arith.mulf %50, %72 : vector<8x128xf32>
    %76 = arith.mulf %51, %64 : vector<8x128xf32>
    %77 = arith.mulf %54, %68 : vector<8x128xf32>
    %78 = arith.mulf %55, %72 : vector<8x128xf32>
    %79 = arith.mulf %56, %64 : vector<8x128xf32>
    %80 = arith.mulf %57, %68 : vector<8x128xf32>
    %81 = arith.mulf %60, %72 : vector<8x128xf32>
    %82 = arith.mulf %73, %73 : vector<8x128xf32>
    %83 = arith.mulf %74, %74 : vector<8x128xf32>
    %84 = arith.addf %82, %83 : vector<8x128xf32>
    %85 = arith.mulf %75, %75 : vector<8x128xf32>
    %86 = arith.addf %84, %85 : vector<8x128xf32>
    %c0_10 = arith.constant 0 : index
    %87 = arith.index_cast %1 : i32 to index
    %c0_11 = arith.constant 0 : index
    %88 = vector.load %arg2[%c0_10, %87, %c0_11] : memref<10x8x128xf32, #tpu.memory_space<vmem>>, vector<1x8x128xf32>
    %89 = vector.shape_cast %88 : vector<1x8x128xf32> to vector<8x128xf32>
    %90 = vector.shape_cast %86 : vector<8x128xf32> to vector<1x8x128xf32>
    tpu.vector_store %arg2[%c0_10, %87, %c0_11], %90 {strides = array<i32>} : memref<10x8x128xf32, #tpu.memory_space<vmem>>, vector<1x8x128xf32>,
    %91 = arith.mulf %73, %76 : vector<8x128xf32>
    %92 = arith.mulf %74, %77 : vector<8x128xf32>
    %93 = arith.addf %91, %92 : vector<8x128xf32>
    %94 = arith.mulf %75, %78 : vector<8x128xf32>
    %95 = arith.addf %93, %94 : vector<8x128xf32>
    %c1_12 = arith.constant 1 : index
    %96 = arith.index_cast %1 : i32 to index
    %c0_13 = arith.constant 0 : index
    %97 = vector.load %arg2[%c1_12, %96, %c0_13] : memref<10x8x128xf32, #tpu.memory_space<vmem>>, vector<1x8x128xf32>
    %98 = vector.shape_cast %97 : vector<1x8x128xf32> to vector<8x128xf32>
    %99 = vector.shape_cast %95 : vector<8x128xf32> to vector<1x8x128xf32>
    tpu.vector_store %arg2[%c1_12, %96, %c0_13], %99 {strides = array<i32>} : memref<10x8x128xf32, #tpu.memory_space<vmem>>, vector<1x8x128xf32>,
    %100 = arith.mulf %73, %79 : vector<8x128xf32>
    %101 = arith.mulf %74, %80 : vector<8x128xf32>
    %102 = arith.addf %100, %101 : vector<8x128xf32>
    %103 = arith.mulf %75, %81 : vector<8x128xf32>
    %104 = arith.addf %102, %103 : vector<8x128xf32>
    %c2_14 = arith.constant 2 : index
    %105 = arith.index_cast %1 : i32 to index
    %c0_15 = arith.constant 0 : index
    %106 = vector.load %arg2[%c2_14, %105, %c0_15] : memref<10x8x128xf32, #tpu.memory_space<vmem>>, vector<1x8x128xf32>
    %107 = vector.shape_cast %106 : vector<1x8x128xf32> to vector<8x128xf32>
    %108 = vector.shape_cast %104 : vector<8x128xf32> to vector<1x8x128xf32>
    tpu.vector_store %arg2[%c2_14, %105, %c0_15], %108 {strides = array<i32>} : memref<10x8x128xf32, #tpu.memory_space<vmem>>, vector<1x8x128xf32>,
    %109 = arith.mulf %76, %76 : vector<8x128xf32>
    %110 = arith.mulf %77, %77 : vector<8x128xf32>
    %111 = arith.addf %109, %110 : vector<8x128xf32>
    %112 = arith.mulf %78, %78 : vector<8x128xf32>
    %113 = arith.addf %111, %112 : vector<8x128xf32>
    %c3_16 = arith.constant 3 : index
    %114 = arith.index_cast %1 : i32 to index
    %c0_17 = arith.constant 0 : index
    %115 = vector.load %arg2[%c3_16, %114, %c0_17] : memref<10x8x128xf32, #tpu.memory_space<vmem>>, vector<1x8x128xf32>
    %116 = vector.shape_cast %115 : vector<1x8x128xf32> to vector<8x128xf32>
    %117 = vector.shape_cast %113 : vector<8x128xf32> to vector<1x8x128xf32>
    tpu.vector_store %arg2[%c3_16, %114, %c0_17], %117 {strides = array<i32>} : memref<10x8x128xf32, #tpu.memory_space<vmem>>, vector<1x8x128xf32>,
    %118 = arith.mulf %76, %79 : vector<8x128xf32>
    %119 = arith.mulf %77, %80 : vector<8x128xf32>
    %120 = arith.addf %118, %119 : vector<8x128xf32>
    %121 = arith.mulf %78, %81 : vector<8x128xf32>
    %122 = arith.addf %120, %121 : vector<8x128xf32>
    %c4_18 = arith.constant 4 : index
    %123 = arith.index_cast %1 : i32 to index
    %c0_19 = arith.constant 0 : index
    %124 = vector.load %arg2[%c4_18, %123, %c0_19] : memref<10x8x128xf32, #tpu.memory_space<vmem>>, vector<1x8x128xf32>
    %125 = vector.shape_cast %124 : vector<1x8x128xf32> to vector<8x128xf32>
    %126 = vector.shape_cast %122 : vector<8x128xf32> to vector<1x8x128xf32>
    tpu.vector_store %arg2[%c4_18, %123, %c0_19], %126 {strides = array<i32>} : memref<10x8x128xf32, #tpu.memory_space<vmem>>, vector<1x8x128xf32>,
    %127 = arith.mulf %79, %79 : vector<8x128xf32>
    %128 = arith.mulf %80, %80 : vector<8x128xf32>
    %129 = arith.addf %127, %128 : vector<8x128xf32>
    %130 = arith.mulf %81, %81 : vector<8x128xf32>
    %131 = arith.addf %129, %130 : vector<8x128xf32>
    %c5_20 = arith.constant 5 : index
    %132 = arith.index_cast %1 : i32 to index
    %c0_21 = arith.constant 0 : index
    %133 = vector.load %arg2[%c5_20, %132, %c0_21] : memref<10x8x128xf32, #tpu.memory_space<vmem>>, vector<1x8x128xf32>
    %134 = vector.shape_cast %133 : vector<1x8x128xf32> to vector<8x128xf32>
    %135 = vector.shape_cast %131 : vector<8x128xf32> to vector<1x8x128xf32>
    tpu.vector_store %arg2[%c5_20, %132, %c0_21], %135 {strides = array<i32>} : memref<10x8x128xf32, #tpu.memory_space<vmem>>, vector<1x8x128xf32>,
    %c7 = arith.constant 7 : index
    %136 = arith.index_cast %1 : i32 to index
    %c0_22 = arith.constant 0 : index
    %137 = vector.load %arg1[%c7, %136, %c0_22] : memref<11x8x128xf32, #tpu.memory_space<vmem>>, vector<1x8x128xf32>
    %138 = vector.shape_cast %137 : vector<1x8x128xf32> to vector<8x128xf32>
    %139 = arith.negf %138 : vector<8x128xf32>
    %140 = math.exp %139 : vector<8x128xf32>
    %cst_23 = arith.constant 1.000000e+00 : f32
    %141 = vector.broadcast %cst_23 : f32 to vector<8x128xf32>
    %142 = arith.addf %141, %140 : vector<8x128xf32>
    %143 = arith.divf %141, %142 : vector<8x128xf32>
    %c6_24 = arith.constant 6 : index
    %144 = arith.index_cast %1 : i32 to index
    %c0_25 = arith.constant 0 : index
    %145 = vector.load %arg2[%c6_24, %144, %c0_25] : memref<10x8x128xf32, #tpu.memory_space<vmem>>, vector<1x8x128xf32>
    %146 = vector.shape_cast %145 : vector<1x8x128xf32> to vector<8x128xf32>
    %147 = vector.shape_cast %143 : vector<8x128xf32> to vector<1x8x128xf32>
    tpu.vector_store %arg2[%c6_24, %144, %c0_25], %147 {strides = array<i32>} : memref<10x8x128xf32, #tpu.memory_space<vmem>>, vector<1x8x128xf32>,
    %c8 = arith.constant 8 : index
    %148 = arith.index_cast %1 : i32 to index
    %c0_26 = arith.constant 0 : index
    %149 = vector.load %arg1[%c8, %148, %c0_26] : memref<11x8x128xf32, #tpu.memory_space<vmem>>, vector<1x8x128xf32>
    %150 = vector.shape_cast %149 : vector<1x8x128xf32> to vector<8x128xf32>
    %151 = arith.negf %150 : vector<8x128xf32>
    %152 = math.exp %151 : vector<8x128xf32>
    %cst_27 = arith.constant 1.000000e+00 : f32
    %153 = vector.broadcast %cst_27 : f32 to vector<8x128xf32>
    %154 = arith.addf %153, %152 : vector<8x128xf32>
    %155 = arith.divf %153, %154 : vector<8x128xf32>
    %c7_28 = arith.constant 7 : index
    %156 = arith.index_cast %1 : i32 to index
    %c0_29 = arith.constant 0 : index
    %157 = vector.load %arg2[%c7_28, %156, %c0_29] : memref<10x8x128xf32, #tpu.memory_space<vmem>>, vector<1x8x128xf32>
    %158 = vector.shape_cast %157 : vector<1x8x128xf32> to vector<8x128xf32>
    %159 = vector.shape_cast %155 : vector<8x128xf32> to vector<1x8x128xf32>
    tpu.vector_store %arg2[%c7_28, %156, %c0_29], %159 {strides = array<i32>} : memref<10x8x128xf32, #tpu.memory_space<vmem>>, vector<1x8x128xf32>,
    %c9 = arith.constant 9 : index
    %160 = arith.index_cast %1 : i32 to index
    %c0_30 = arith.constant 0 : index
    %161 = vector.load %arg1[%c9, %160, %c0_30] : memref<11x8x128xf32, #tpu.memory_space<vmem>>, vector<1x8x128xf32>
    %162 = vector.shape_cast %161 : vector<1x8x128xf32> to vector<8x128xf32>
    %163 = arith.negf %162 : vector<8x128xf32>
    %164 = math.exp %163 : vector<8x128xf32>
    %cst_31 = arith.constant 1.000000e+00 : f32
    %165 = vector.broadcast %cst_31 : f32 to vector<8x128xf32>
    %166 = arith.addf %165, %164 : vector<8x128xf32>
    %167 = arith.divf %165, %166 : vector<8x128xf32>
    %c8_32 = arith.constant 8 : index
    %168 = arith.index_cast %1 : i32 to index
    %c0_33 = arith.constant 0 : index
    %169 = vector.load %arg2[%c8_32, %168, %c0_33] : memref<10x8x128xf32, #tpu.memory_space<vmem>>, vector<1x8x128xf32>
    %170 = vector.shape_cast %169 : vector<1x8x128xf32> to vector<8x128xf32>
    %171 = vector.shape_cast %167 : vector<8x128xf32> to vector<1x8x128xf32>
    tpu.vector_store %arg2[%c8_32, %168, %c0_33], %171 {strides = array<i32>} : memref<10x8x128xf32, #tpu.memory_space<vmem>>, vector<1x8x128xf32>,
    %c10 = arith.constant 10 : index
    %172 = arith.index_cast %1 : i32 to index
    %c0_34 = arith.constant 0 : index
    %173 = vector.load %arg1[%c10, %172, %c0_34] : memref<11x8x128xf32, #tpu.memory_space<vmem>>, vector<1x8x128xf32>
    %174 = vector.shape_cast %173 : vector<1x8x128xf32> to vector<8x128xf32>
    %175 = arith.negf %174 : vector<8x128xf32>
    %176 = math.exp %175 : vector<8x128xf32>
    %cst_35 = arith.constant 1.000000e+00 : f32
    %177 = vector.broadcast %cst_35 : f32 to vector<8x128xf32>
    %178 = arith.addf %177, %176 : vector<8x128xf32>
    %179 = arith.divf %177, %178 : vector<8x128xf32>
    %c9_36 = arith.constant 9 : index
    %180 = arith.index_cast %1 : i32 to index
    %c0_37 = arith.constant 0 : index
    %181 = vector.load %arg2[%c9_36, %180, %c0_37] : memref<10x8x128xf32, #tpu.memory_space<vmem>>, vector<1x8x128xf32>
    %182 = vector.shape_cast %181 : vector<1x8x128xf32> to vector<8x128xf32>
    %183 = vector.shape_cast %179 : vector<8x128xf32> to vector<1x8x128xf32>
    tpu.vector_store %arg2[%c9_36, %180, %c0_37], %183 {strides = array<i32>} : memref<10x8x128xf32, #tpu.memory_space<vmem>>, vector<1x8x128xf32>,
    %c1_i32 = arith.constant 1 : i32
    return
  }
  func.func @transform_0(%arg0: i32) -> (i32, i32, i32) {
    %c0_i32 = arith.constant 0 : i32
    %c0_i32_0 = arith.constant 0 : i32
    %c0_i32_1 = arith.constant 0 : i32
    return %c0_i32, %arg0, %c0_i32_0 : i32, i32, i32
  }
  func.func @transform_1(%arg0: i32) -> (i32, i32, i32) {
    %c0_i32 = arith.constant 0 : i32
    %c0_i32_0 = arith.constant 0 : i32
    %c0_i32_1 = arith.constant 0 : i32
    return %c0_i32, %arg0, %c0_i32_0 : i32, i32, i32
  }
}

</mosaic_0001>

<llo_original>
// kernel: gaussian_forward.1
$region0: #{gaussian_forward.1}
  #allocation0 [shape = 'u32[]', space=smem, size = 0x4, offset = 0x4, fixed_abs, tag = 'smem constant byte address 0x4 - core index']
  #allocation1 [shape = 'u32[144,128]{1,0:T(1,128)}', space=vmem, size = 0x12000, scoped, tag = 'internal scratch']
  %s0 = inlined_call_operand.vmem [shape: f32[11,8,128], index: 0, kind: input, shape index: {}]
  %s1 = inlined_call_operand.vmem [shape: f32[10,8,128], index: 1, kind: output, shape index: {}]
  %s2 = sld [smem:[#allocation0]]
  $region14: #{gaussian_forward.1} parent=0
    _
  %s4 = ssub.s32 1, %s2
  %s5 = scalar_select 0, %s4, %s2
  // Predicated region
  $region2: #{gaussian_forward.1} parent=0 // pred_check
    _
  $region3: #{gaussian_forward.1} parent=0 // pred_check_branch
    %7 = sbr.rel (0) target = $region5
  $region4: #{gaussian_forward.1} parent=0 // pred_region
    _
  $region5: #{gaussian_forward.1} parent=0 // pred_fallthru
    _
  %v8 = vld [vmem:[%s0] sm:$0xff]
  %s9 = sadd.s32 0, 8
  %s10 = scalar_lea.vmem %s0, %s9
  %v11 = vld [vmem:[%s10] sm:$0xff]
  %s12 = sadd.s32 0, 16
  %s13 = scalar_lea.vmem %s0, %s12
  %v14 = vld [vmem:[%s13] sm:$0xff]
  %s15 = sadd.s32 0, 24
  %s16 = scalar_lea.vmem %s0, %s15
  %v17 = vld [vmem:[%s16] sm:$0xff]
  %v18 = vmul.f32 %v8, %v8
  %v19 = vmul.f32 %v11, %v11
  %v20 = vadd.f32 %v18, %v19
  %v21 = vmul.f32 %v14, %v14
  %v22 = vadd.f32 %v20, %v21
  %v23 = vmul.f32 %v17, %v17
  %v24 = vadd.f32 %v22, %v23
  %v25 = vmax.f32 %v24, 1e-24
  %v26 = vrsqrt.pop %v25
  %v27 = vmul.f32 %v8, %v26
  %v28 = vmul.f32 %v11, %v26
  %v29 = vmul.f32 %v14, %v26
  %v30 = vmul.f32 %v17, %v26
  %v31 = vmul.f32 %v28, %v28
  %v32 = vmul.f32 %v29, %v29
  %v33 = vmul.f32 %v30, %v30
  %v34 = vmul.f32 %v28, %v29
  %v35 = vmul.f32 %v28, %v30
  %v36 = vmul.f32 %v29, %v30
  %v37 = vmul.f32 %v27, %v28
  %v38 = vmul.f32 %v27, %v29
  %v39 = vmul.f32 %v27, %v30
  %v40 = vadd.f32 %v31, %v31
  %v41 = vadd.f32 %v32, %v32
  %v42 = vadd.f32 %v33, %v33
  %v43 = vadd.f32 %v34, %v34
  %v44 = vadd.f32 %v35, %v35
  %v45 = vadd.f32 %v36, %v36
  %v46 = vadd.f32 %v37, %v37
  %v47 = vadd.f32 %v38, %v38
  %v48 = vadd.f32 %v39, %v39
  %v49 = vsub.f32 1.0, %v41
  %v50 = vsub.f32 %v49, %v42
  %v51 = vsub.f32 %v43, %v48
  %v52 = vadd.f32 %v44, %v47
  %v53 = vadd.f32 %v43, %v48
  %v54 = vsub.f32 1.0, %v40
  %v55 = vsub.f32 %v54, %v42
  %v56 = vsub.f32 %v45, %v46
  %v57 = vsub.f32 %v44, %v47
  %v58 = vadd.f32 %v45, %v46
  %v59 = vsub.f32 %v54, %v41
  %s60 = sadd.s32 0, 32
  %s61 = scalar_lea.vmem %s0, %s60
  %v62 = vld [vmem:[%s61] sm:$0xff]
  %v63 = vmul.f32 %v62, 1.442695
  %v64 = vpow.pop %v63
  %s65 = sadd.s32 0, 40
  %s66 = scalar_lea.vmem %s0, %s65
  %v67 = vld [vmem:[%s66] sm:$0xff]
  %v68 = vmul.f32 %v67, 1.442695
  %v69 = vpow.pop %v68
  %s70 = sadd.s32 0, 48
  %s71 = scalar_lea.vmem %s0, %s70
  %v72 = vld [vmem:[%s71] sm:$0xff]
  %v73 = vmul.f32 %v72, 1.442695
  %v74 = vpow.pop %v73
  %v75 = vmul.f32 %v50, %v64
  %v76 = vmul.f32 %v51, %v69
  %v77 = vmul.f32 %v52, %v74
  %v78 = vmul.f32 %v53, %v64
  %v79 = vmul.f32 %v55, %v69
  %v80 = vmul.f32 %v56, %v74
  %v81 = vmul.f32 %v57, %v64
  %v82 = vmul.f32 %v58, %v69
  %v83 = vmul.f32 %v59, %v74
  %v84 = vmul.f32 %v75, %v75
  %v85 = vmul.f32 %v76, %v76
  %v86 = vadd.f32 %v84, %v85
  %v87 = vmul.f32 %v77, %v77
  %v88 = vadd.f32 %v86, %v87
  %89 = vst [vmem:[%s1] sm:$0xff] %v88
  %v90 = vmul.f32 %v75, %v78
  %v91 = vmul.f32 %v76, %v79
  %v92 = vadd.f32 %v90, %v91
  %v93 = vmul.f32 %v77, %v80
  %v94 = vadd.f32 %v92, %v93
  %s95 = scalar_lea.vmem %s1, %s9
  %96 = vst [vmem:[%s95] sm:$0xff] %v94
  %v97 = vmul.f32 %v75, %v81
  %v98 = vmul.f32 %v76, %v82
  %v99 = vadd.f32 %v97, %v98
  %v100 = vmul.f32 %v77, %v83
  %v101 = vadd.f32 %v99, %v100
  %s102 = scalar_lea.vmem %s1, %s12
  %103 = vst [vmem:[%s102] sm:$0xff] %v101
  %v104 = vmul.f32 %v78, %v78
  %v105 = vmul.f32 %v79, %v79
  %v106 = vadd.f32 %v104, %v105
  %v107 = vmul.f32 %v80, %v80
  %v108 = vadd.f32 %v106, %v107
  %s109 = scalar_lea.vmem %s1, %s15
  %110 = vst [vmem:[%s109] sm:$0xff] %v108
  %v111 = vmul.f32 %v78, %v81
  %v112 = vmul.f32 %v79, %v82
  %v113 = vadd.f32 %v111, %v112
  %v114 = vmul.f32 %v80, %v83
  %v115 = vadd.f32 %v113, %v114
  %s116 = scalar_lea.vmem %s1, %s60
  %117 = vst [vmem:[%s116] sm:$0xff] %v115
  %v118 = vmul.f32 %v81, %v81
  %v119 = vmul.f32 %v82, %v82
  %v120 = vadd.f32 %v118, %v119
  %v121 = vmul.f32 %v83, %v83
  %v122 = vadd.f32 %v120, %v121
  %s123 = scalar_lea.vmem %s1, %s65
  %124 = vst [vmem:[%s123] sm:$0xff] %v122
  %s125 = sadd.s32 0, 56
  %s126 = scalar_lea.vmem %s0, %s125
  %v127 = vld [vmem:[%s126] sm:$0xff]
  %v128 = vxor.u32 %v127, 2147483648
  %v129 = vmul.f32 %v128, 1.442695
  %v130 = vpow.pop %v129
  %v131 = vadd.f32 %v130, 1.0
  %v132 = vrcp.pop %v131
  %v133 = vmul.f32 1.0, %v132
  %s134 = scalar_lea.vmem %s1, %s70
  %135 = vst [vmem:[%s134] sm:$0xff] %v133
  %s136 = sadd.s32 0, 64
  %s137 = scalar_lea.vmem %s0, %s136
  %v138 = vld [vmem:[%s137] sm:$0xff]
  %v139 = vxor.u32 %v138, 2147483648
  %v140 = vmul.f32 %v139, 1.442695
  %v141 = vpow.pop %v140
  %v142 = vadd.f32 %v141, 1.0
  %v143 = vrcp.pop %v142
  %v144 = vmul.f32 1.0, %v143
  %s145 = scalar_lea.vmem %s1, %s125
  %146 = vst [vmem:[%s145] sm:$0xff] %v144
  %s147 = sadd.s32 0, 72
  %s148 = scalar_lea.vmem %s0, %s147
  %v149 = vld [vmem:[%s148] sm:$0xff]
  %v150 = vxor.u32 %v149, 2147483648
  %v151 = vmul.f32 %v150, 1.442695
  %v152 = vpow.pop %v151
  %v153 = vadd.f32 %v152, 1.0
  %v154 = vrcp.pop %v153
  %v155 = vmul.f32 1.0, %v154
  %s156 = scalar_lea.vmem %s1, %s136
  %157 = vst [vmem:[%s156] sm:$0xff] %v155
  %s158 = sadd.s32 0, 80
  %s159 = scalar_lea.vmem %s0, %s158
  %v160 = vld [vmem:[%s159] sm:$0xff]
  %v161 = vxor.u32 %v160, 2147483648
  %v162 = vmul.f32 %v161, 1.442695
  %v163 = vpow.pop %v162
  %v164 = vadd.f32 %v163, 1.0
  %v165 = vrcp.pop %v164
  %v166 = vmul.f32 1.0, %v165
  %s167 = scalar_lea.vmem %s1, %s147
  %168 = vst [vmem:[%s167] sm:$0xff] %v166
  // Predicated region
  $region6: #{gaussian_forward.1} parent=0 // pred_check
    _
  $region7: #{gaussian_forward.1} parent=0 // pred_check_branch
    %170 = sbr.rel (0) target = $region9
  $region8: #{gaussian_forward.1} parent=0 // pred_region
    _
  $region9: #{gaussian_forward.1} parent=0 // pred_fallthru
    _
  // Predicated region
  $region10: #{gaussian_forward.1} parent=0 // pred_check
    _
  $region11: #{gaussian_forward.1} parent=0 // pred_check_branch
    %172 = sbr.rel (0) target = $region13
  $region12: #{gaussian_forward.1} parent=0 // pred_region
    _
  $region13: #{gaussian_forward.1} parent=0 // pred_fallthru
    _

</llo_original>
